<compile_context>
chip_gen: v6e
topology: v6e:2x2x1
jax: 0.10.0
libtpu: 0.0.40
codegen_flags: <defaults>
</compile_context>

<pallas_src>
import functools

import jax
import jax.numpy as jnp
from jax.experimental import pallas as pl
from jax.experimental.pallas import tpu as pltpu


def _round_up(x, m):
    return (x + m - 1) // m * m


def _center_alignment_kernel(comb_ref, feat_ref, out_ref, sums_ref, counts_ref,
                             *, c_pad, inv_denom):
    """One grid step over an N-tile.

    comb_ref  : (1, TN) int32  combined index = domain * c_pad + label, -1 = padding
    feat_ref  : (TN, d) bf16   feature tile
    out_ref   : (1, 1) f32     SMEM scalar loss (written on the last step)
    sums_ref  : (3*c_pad, d) f32 VMEM accumulator (per domain/class feature sums)
    counts_ref: (3*c_pad, 1) f32 VMEM accumulator (per domain/class counts)
    """
    step = pl.program_id(0)
    rows = 3 * c_pad

    @pl.when(step == 0)
    def _init():
        sums_ref[...] = jnp.zeros_like(sums_ref)
        counts_ref[...] = jnp.zeros_like(counts_ref)

    comb = comb_ref[...]                    # (1, TN) int32
    feat = feat_ref[...]                    # (TN, d) bf16
    tn = feat.shape[0]

    # Stacked (domain, class) one-hot: mask[r, n] = (comb[n] == r).
    row_iota = jax.lax.broadcasted_iota(jnp.int32, (rows, tn), 0)
    mask = row_iota == jnp.broadcast_to(comb, (rows, tn))          # bool

    # One MXU matmul for all 3 domains' class sums, f32 accumulation.
    mask_mm = mask.astype(feat.dtype)                              # 0/1 exact in bf16
    sums_ref[...] += jnp.dot(mask_mm, feat, preferred_element_type=jnp.float32)

    # Per-(domain, class) sample counts (f32 row reduction of the same mask).
    counts_ref[...] += jnp.sum(mask.astype(jnp.float32), axis=1, keepdims=True)

    @pl.when(step == pl.num_programs(0) - 1)
    def _finalize():
        counts = jnp.maximum(counts_ref[...], 1.0)                 # clamp AFTER full accum
        inv_counts = pl.reciprocal(counts, approx=False)           # (rows, 1)
        cent = sums_ref[...] * inv_counts                          # (rows, d) centroids

        c1 = cent[0:c_pad, :]
        c2 = cent[c_pad:2 * c_pad, :]
        c3 = cent[2 * c_pad:3 * c_pad, :]
        # Padded class rows are zero in every domain -> zero contribution.
        d12 = c1 - c2
        d13 = c1 - c3
        d23 = c2 - c3
        total = jnp.sum(d12 * d12 + d13 * d13 + d23 * d23)
        out_ref[0, 0] = total * inv_denom                          # divide by true n_class*d


def center_alignment_loss(feature, label, domain_index, n_class, *, tile_n=512):
    """feature: (N, d) float; label: (N,) int; domain_index: (N,) int in {0,1,2}."""
    N, d = feature.shape

    c_pad = _round_up(max(int(n_class), 1), 8)   # per-domain class rows, sublane aligned
    rows = 3 * c_pad

    tn = _round_up(min(tile_n, _round_up(N, 128)), 128)
    n_pad = _round_up(N, tn)
    n_tiles = n_pad // tn

    # bf16 feature streaming; pad N to a whole number of tiles.
    feat = feature.astype(jnp.bfloat16)
    if n_pad != N:
        feat = jnp.pad(feat, ((0, n_pad - N), (0, 0)))

    comb = domain_index.astype(jnp.int32) * c_pad + label.astype(jnp.int32)
    if n_pad != N:
        comb = jnp.pad(comb, (0, n_pad - N), constant_values=-1)   # -1 never matches
    comb = comb.reshape(1, n_pad)

    kernel = functools.partial(
        _center_alignment_kernel,
        c_pad=c_pad,
        inv_denom=1.0 / float(n_class * d),
    )

    out = pl.pallas_call(
        kernel,
        out_shape=jax.ShapeDtypeStruct((1, 1), jnp.float32),
        grid=(n_tiles,),
        in_specs=[
            pl.BlockSpec((1, tn), lambda i: (0, i)),     # combined indices
            pl.BlockSpec((tn, d), lambda i: (i, 0)),     # feature tile
        ],
        out_specs=pl.BlockSpec(memory_space=pltpu.MemorySpace.SMEM),
        scratch_shapes=[
            pltpu.VMEM((rows, d), jnp.float32),          # class-sum accumulator
            pltpu.VMEM((rows, 1), jnp.float32),          # count accumulator
        ],
        compiler_params=pltpu.CompilerParams(
            dimension_semantics=("arbitrary",),          # N-axis is a reduction
            vmem_limit_bytes=64 * 1024 * 1024,
        ),
    )(comb, feat)
    return out[0, 0]


def _reference_loss(feature, label, domain_index, n_class):
    """Pure-JAX f32 reference for verification."""
    feature = feature.astype(jnp.float32)
    onehot = jax.nn.one_hot(label, n_class, dtype=jnp.float32)     # (N, C)

    def centroid(k):
        sel = (domain_index == k).astype(jnp.float32)              # (N,)
        oh = onehot * sel[:, None]
        sums = oh.T @ feature                                      # (C, d)
        counts = jnp.maximum(oh.sum(axis=0), 1.0)[:, None]         # (C, 1)
        return sums / counts

    c1, c2, c3 = centroid(0), centroid(1), centroid(2)
    mse = lambda a, b: jnp.mean((a - b) ** 2)
    return mse(c1, c2) + mse(c1, c3) + mse(c2, c3)


if __name__ == "__main__":
    key = jax.random.PRNGKey(0)
    k_feat, k_lab, k_dom = jax.random.split(key, 3)

    N, D, N_CLASS = 24, 32, 4   # src_class = 4
    feature = jax.random.normal(k_feat, (N, D), dtype=jnp.float32)
    label = jax.random.randint(k_lab, (N,), 0, N_CLASS, dtype=jnp.int32)
    domain_index = jax.random.randint(k_dom, (N,), 0, 3, dtype=jnp.int32)

    loss = center_alignment_loss(feature, label, domain_index, N_CLASS)
    loss = jax.block_until_ready(loss)

    # Validate against an f32 reference computed on the bf16-rounded features
    # (the kernel streams features in bf16 with f32 accumulation on the MXU).
    feat_bf = feature.astype(jnp.bfloat16).astype(jnp.float32)
    ref = _reference_loss(feat_bf, label, domain_index, N_CLASS)
    assert jnp.allclose(loss, ref, rtol=5e-3, atol=1e-5), (loss, ref)

    print("KERNEL_OK")
</pallas_src>

<mosaic_0001>
module attributes {stable_mosaic.version = 11 : i64} {
  func.func @_center_alignment_kernel(%arg0: i32, %arg1: memref<1x128xi32, #tpu.memory_space<vmem>>, %arg2: memref<128x32xbf16, #tpu.memory_space<vmem>>, %arg3: memref<1x1xf32, #tpu.memory_space<smem>>, %arg4: memref<24x32xf32, #tpu.memory_space<vmem>>, %arg5: memref<24x1xf32, #tpu.memory_space<vmem>>) attributes {dimension_semantics = [#tpu.dimension_semantics<arbitrary>], iteration_bounds = array<i64: 1>, scalar_prefetch = 0 : i64, scratch_operands = 2 : i64, tpu.core_type = #tpu.core_type<tc>, window_params = [{transform_indices = @transform_0, window_bounds = array<i64: 1, 128>}, {transform_indices = @transform_1, window_bounds = array<i64: 128, 32>}, {transform_indices = @transform_2, window_bounds = array<i64: 1, 1>}]} {
    %c0_i32 = arith.constant 0 : i32
    %0 = arith.cmpi eq, %arg0, %c0_i32 : i32
    %1 = arith.extui %0 : i1 to i32
    %c0_i32_0 = arith.constant 0 : i32
    %2 = arith.cmpi ne, %1, %c0_i32_0 : i32
    scf.if %2 {
      %cst_15 = arith.constant 0.000000e+00 : f32
      %26 = vector.broadcast %cst_15 : f32 to vector<24x32xf32>
      %c0_16 = arith.constant 0 : index
      %c0_17 = arith.constant 0 : index
      %27 = vector.load %arg4[%c0_16, %c0_17] : memref<24x32xf32, #tpu.memory_space<vmem>>, vector<24x32xf32>
      tpu.vector_store %arg4[%c0_16, %c0_17], %26 {strides = array<i32>} : memref<24x32xf32, #tpu.memory_space<vmem>>, vector<24x32xf32>,
      %cst_18 = arith.constant 0.000000e+00 : f32
      %28 = vector.broadcast %cst_18 : f32 to vector<24x1xf32>
      %c0_19 = arith.constant 0 : index
      %c0_20 = arith.constant 0 : index
      %29 = vector.load %arg5[%c0_19, %c0_20] : memref<24x1xf32, #tpu.memory_space<vmem>>, vector<24x1xf32>
      tpu.vector_store %arg5[%c0_19, %c0_20], %28 {strides = array<i32>} : memref<24x1xf32, #tpu.memory_space<vmem>>, vector<24x1xf32>,
    } else {
    }
    %c0 = arith.constant 0 : index
    %c0_1 = arith.constant 0 : index
    %3 = vector.load %arg1[%c0, %c0_1] : memref<1x128xi32, #tpu.memory_space<vmem>>, vector<1x128xi32>
    %c0_2 = arith.constant 0 : index
    %c0_3 = arith.constant 0 : index
    %4 = vector.load %arg2[%c0_2, %c0_3] : memref<128x32xbf16, #tpu.memory_space<vmem>>, vector<128x32xbf16>
    %5 = tpu.iota {dimensions = array<i32: 0>} : vector<24x128xi32>
    %6 = vector.shape_cast %3 : vector<1x128xi32> to vector<1x128xi32>
    %7 = vector.broadcast %6 : vector<1x128xi32> to vector<24x128xi32>
    %8 = arith.cmpi eq, %5, %7 : vector<24x128xi32>
    %9 = arith.extui %8 : vector<24x128xi1> to vector<24x128xi32>
    %10 = arith.sitofp %9 : vector<24x128xi32> to vector<24x128xf32>
    %11 = arith.truncf %10 : vector<24x128xf32> to vector<24x128xbf16>
    %c0_4 = arith.constant 0 : index
    %c0_5 = arith.constant 0 : index
    %12 = vector.load %arg4[%c0_4, %c0_5] : memref<24x32xf32, #tpu.memory_space<vmem>>, vector<24x32xf32>
    %cst = arith.constant dense<0.000000e+00> : vector<24x32xf32>
    %13 = tpu.matmul %11, %4, %cst {dimension_numbers = #tpu.dot_dimension_numbers<[1], [0], [0], [1], [0, 0, 1, 1], [], []>} : vector<24x128xbf16>, vector<128x32xbf16>, vector<24x32xf32> -> vector<24x32xf32>
    %14 = arith.addf %12, %13 : vector<24x32xf32>
    %c0_6 = arith.constant 0 : index
    %c0_7 = arith.constant 0 : index
    %15 = vector.load %arg4[%c0_6, %c0_7] : memref<24x32xf32, #tpu.memory_space<vmem>>, vector<24x32xf32>
    tpu.vector_store %arg4[%c0_6, %c0_7], %14 {strides = array<i32>} : memref<24x32xf32, #tpu.memory_space<vmem>>, vector<24x32xf32>,
    %c0_8 = arith.constant 0 : index
    %c0_9 = arith.constant 0 : index
    %16 = vector.load %arg5[%c0_8, %c0_9] : memref<24x1xf32, #tpu.memory_space<vmem>>, vector<24x1xf32>
    %17 = arith.extui %8 : vector<24x128xi1> to vector<24x128xi32>
    %18 = arith.sitofp %17 : vector<24x128xi32> to vector<24x128xf32>
    %cst_10 = arith.constant dense<0.000000e+00> : vector<24xf32>
    %19 = vector.multi_reduction <add>, %18, %cst_10 [1] : vector<24x128xf32> to vector<24xf32>
    %20 = vector.shape_cast %19 : vector<24xf32> to vector<24x1xf32>
    %21 = arith.addf %16, %20 : vector<24x1xf32>
    %c0_11 = arith.constant 0 : index
    %c0_12 = arith.constant 0 : index
    %22 = vector.load %arg5[%c0_11, %c0_12] : memref<24x1xf32, #tpu.memory_space<vmem>>, vector<24x1xf32>
    tpu.vector_store %arg5[%c0_11, %c0_12], %21 {strides = array<i32>} : memref<24x1xf32, #tpu.memory_space<vmem>>, vector<24x1xf32>,
    %c0_i32_13 = arith.constant 0 : i32
    %23 = arith.cmpi eq, %arg0, %c0_i32_13 : i32
    %24 = arith.extui %23 : i1 to i32
    %c0_i32_14 = arith.constant 0 : i32
    %25 = arith.cmpi ne, %24, %c0_i32_14 : i32
    scf.if %25 {
      %c0_15 = arith.constant 0 : index
      %c0_16 = arith.constant 0 : index
      %26 = vector.load %arg5[%c0_15, %c0_16] : memref<24x1xf32, #tpu.memory_space<vmem>>, vector<24x1xf32>
      %cst_17 = arith.constant 1.000000e+00 : f32
      %27 = vector.broadcast %cst_17 : f32 to vector<24x1xf32>
      %28 = arith.maximumf %26, %27 : vector<24x1xf32>
      %29 = tpu.reciprocal %28 : vector<24x1xf32> -> vector<24x1xf32>
      %c0_18 = arith.constant 0 : index
      %c0_19 = arith.constant 0 : index
      %30 = vector.load %arg4[%c0_18, %c0_19] : memref<24x32xf32, #tpu.memory_space<vmem>>, vector<24x32xf32>
      %31 = vector.broadcast %29 : vector<24x1xf32> to vector<24x32xf32>
      %32 = arith.mulf %30, %31 : vector<24x32xf32>
      %33 = vector.extract_strided_slice %32 {offsets = [0, 0], sizes = [8, 32], strides = [1, 1]} : vector<24x32xf32> to vector<8x32xf32>
      %34 = vector.extract_strided_slice %32 {offsets = [8, 0], sizes = [8, 32], strides = [1, 1]} : vector<24x32xf32> to vector<8x32xf32>
      %35 = vector.extract_strided_slice %32 {offsets = [16, 0], sizes = [8, 32], strides = [1, 1]} : vector<24x32xf32> to vector<8x32xf32>
      %36 = arith.subf %33, %34 : vector<8x32xf32>
      %37 = arith.subf %33, %35 : vector<8x32xf32>
      %38 = arith.subf %34, %35 : vector<8x32xf32>
      %39 = arith.mulf %36, %36 : vector<8x32xf32>
      %40 = arith.mulf %37, %37 : vector<8x32xf32>
      %41 = arith.addf %39, %40 : vector<8x32xf32>
      %42 = arith.mulf %38, %38 : vector<8x32xf32>
      %43 = arith.addf %41, %42 : vector<8x32xf32>
      %44 = vector.shape_cast %43 : vector<8x32xf32> to vector<1x8x32xf32>
      %cst_20 = arith.constant dense<0.000000e+00> : vector<1xf32>
      %45 = vector.multi_reduction <add>, %44, %cst_20 [1, 2] : vector<1x8x32xf32> to vector<1xf32>
      %46 = vector.shape_cast %45 : vector<1xf32> to vector<1x1x1xf32>
      %47 = vector.extract %46[0, 0, 0] : f32 from vector<1x1x1xf32>
      %cst_21 = arith.constant 7.812500e-03 : f32
      %48 = arith.mulf %47, %cst_21 : f32
      %c0_22 = arith.constant 0 : index
      %c0_23 = arith.constant 0 : index
      %49 = memref.load %arg3[%c0_22, %c0_23] : memref<1x1xf32, #tpu.memory_space<smem>>
      memref.store %48, %arg3[%c0_22, %c0_23] : memref<1x1xf32, #tpu.memory_space<smem>>
    } else {
    }
    return
  }
  func.func @transform_0(%arg0: i32) -> (i32, i32) {
    %c0_i32 = arith.constant 0 : i32
    %c0_i32_0 = arith.constant 0 : i32
    return %c0_i32, %arg0 : i32, i32
  }
  func.func @transform_1(%arg0: i32) -> (i32, i32) {
    %c0_i32 = arith.constant 0 : i32
    %c0_i32_0 = arith.constant 0 : i32
    return %arg0, %c0_i32 : i32, i32
  }
  func.func @transform_2(%arg0: i32) -> (i32, i32) {
    %c0_i32 = arith.constant 0 : i32
    %c0_i32_0 = arith.constant 0 : i32
    %c0_i32_1 = arith.constant 0 : i32
    return %c0_i32, %c0_i32_0 : i32, i32
  }
}

</mosaic_0001>

<llo_original>
// kernel: tpu_custom_call.1
$region0: #{tpu_custom_call.1}
  #allocation0 [shape = 'u32[]', space=smem, size = 0x4, offset = 0x4, fixed_abs, tag = 'smem constant byte address 0x4 - core index']
  #allocation1 [shape = 'u32[144,128]{1,0:T(1,128)}', space=vmem, size = 0x12000, scoped, tag = 'internal scratch']
  #allocation2 [shape = 'f32[24,32]{1,0:T(8,128)}', space=vmem, size = 0x3000, scoped, tag = 'scratch operand']
  #allocation3 [shape = 'f32[24,1]{1,0:T(8,128)}', space=vmem, size = 0x3000, scoped, tag = 'scratch operand']
  %s0 = inlined_call_operand.vmem [shape: s32[1,128], index: 0, kind: input, shape index: {}]
  %s1 = inlined_call_operand.vmem [shape: bf16[128,32], index: 1, kind: input, shape index: {}]
  %s2 = inlined_call_operand.hbm [shape: f32[1,1], index: 2, kind: output, shape index: {}]
  %s3 = sld [smem:[#allocation0]]
  $region26: #{tpu_custom_call.1} parent=0
    _
  %s5 = ssub.s32 1, %s3
  %s6 = scalar_select 0, %s5, %s3
  $region1: #{tpu_custom_call.1} parent=0
    #allocation4 [shape = 'u8[512]{0}', space=smem, size = 0x200, scoped, tag = 'output window, operand 0, single buffered']
    #allocation5 [shape = 's32[1]{0}', space=sflag, size = 0x4, scoped, tag = 'scoped memory for tpu_custom_call.1']
    %7 = vsyncpa [#allocation5], 0
    // Predicated region
    $region2: #{tpu_custom_call.1} parent=1 // pred_check
      _
    $region3: #{tpu_custom_call.1} parent=1 // pred_check_branch
      %9 = sbr.rel (0) target = $region5
    $region4: #{tpu_custom_call.1} parent=1 // pred_region
      _
    $region5: #{tpu_custom_call.1} parent=1 // pred_fallthru
      _
    // Predicated region
    $region6: #{tpu_custom_call.1} parent=1 // pred_check
      _
    $region7: #{tpu_custom_call.1} parent=1 // pred_check_branch
      %11 = sbr.rel (0) target = $region9
    $region8: #{tpu_custom_call.1} parent=1 // pred_region
      _
    $region9: #{tpu_custom_call.1} parent=1 // pred_fallthru
      _
    %p13 = scmp.eq.s32.totalorder 0, 0
    // Predicated region
    $region10: #{tpu_custom_call.1} parent=1 // pred_check
      %p14 = pneg %p13
    $region11: #{tpu_custom_call.1} parent=1 // pred_check_branch
      %16 = sbr.rel (%p14) target = $region13
    $region12: #{tpu_custom_call.1} parent=1 // pred_region
      %vm17 = vcmask 261120
      %18 = vst.msk [vmem:[#allocation2] sm:$0xff] %vm17, 0.0
      %19 = vst.msk [vmem:[#allocation2 + $0x8] sm:$0xff] %vm17, 0.0
      %20 = vst.msk [vmem:[#allocation2 + $0x10] sm:$0xff] %vm17, 0.0
      %vm21 = vcmask 7168
      %22 = vst.msk [vmem:[#allocation3] sm:$0xff] %vm21, 0.0
      %23 = vst.msk [vmem:[#allocation3 + $0x8] sm:$0xff] %vm21, 0.0
      %24 = vst.msk [vmem:[#allocation3 + $0x10] sm:$0xff] %vm21, 0.0
    $region13: #{tpu_custom_call.1} parent=1 // pred_fallthru
      _
    %v25 = vld [vmem:[%s0] sm:$0x1]
    %v26 = vld [vmem:[%s1] sm:$0xf]
    %v27 = vld [vmem:[%s1 + $0x4] sm:$0xf]
    %v28 = vld [vmem:[%s1 + $0x8] sm:$0xf]
    %v29 = vld [vmem:[%s1 + $0xc] sm:$0xf]
    %v30 = vld [vmem:[%s1 + $0x10] sm:$0xf]
    %v31 = vld [vmem:[%s1 + $0x14] sm:$0xf]
    %v32 = vld [vmem:[%s1 + $0x18] sm:$0xf]
    %v33 = vld [vmem:[%s1 + $0x1c] sm:$0xf]
    %v34 = vld [vmem:[%s1 + $0x20] sm:$0xf]
    %v35 = vld [vmem:[%s1 + $0x24] sm:$0xf]
    %v36 = vld [vmem:[%s1 + $0x28] sm:$0xf]
    %v37 = vld [vmem:[%s1 + $0x2c] sm:$0xf]
    %v38 = vld [vmem:[%s1 + $0x30] sm:$0xf]
    %v39 = vld [vmem:[%s1 + $0x34] sm:$0xf]
    %v40 = vld [vmem:[%s1 + $0x38] sm:$0xf]
    %v41 = vld [vmem:[%s1 + $0x3c] sm:$0xf]
    %v42 = vlaneseq
    %v43 = vshrl.u32 %v42, 7
    %v44 = vadd.s32 %v43, 8
    %v45 = vadd.s32 %v43, 16
    %v46 = vlaneseq
    %v47 = vshrl.u32 %v46, 7
    %v48 = vsub.s32 0, %v47
    %v49 = vrot.slane %v25, %v48
    %vm50 = vcmp.eq.s32.totalorder %v43, %v49
    %vm51 = vcmp.eq.s32.totalorder %v44, %v49
    %vm52 = vcmp.eq.s32.totalorder %v45, %v49
    %v53 = vsel %vm50, 1, 0
    %v54 = vsel %vm51, 1, 0
    %v55 = vsel %vm52, 1, 0
    %v56 = vcvt.s32.f32 %v53
    %v57 = vcvt.s32.f32 %v54
    %v58 = vcvt.s32.f32 %v55
    %v59 = vpack.c.bf16 %v57, %v56
    %v60 = vpack.c.bf16 %v58, %v58
    %v61 = vld [vmem:[#allocation2] sm:$0xff]
    %v62 = vld [vmem:[#allocation2 + $0x8] sm:$0xff]
    %v63 = vld [vmem:[#allocation2 + $0x10] sm:$0xff]
    %v80 = vunpack.c.l.b16 %v26
    %v81 = vunpack.c.l.b16 %v27
    %v82 = vunpack.c.l.b16 %v28
    %v83 = vunpack.c.l.b16 %v29
    %v84 = vunpack.c.l.b16 %v30
    %v85 = vunpack.c.l.b16 %v31
    %v86 = vunpack.c.l.b16 %v32
    %v87 = vunpack.c.l.b16 %v33
    %v88 = vunpack.c.l.b16 %v34
    %v89 = vunpack.c.l.b16 %v35
    %v90 = vunpack.c.l.b16 %v36
    %v91 = vunpack.c.l.b16 %v37
    %v92 = vunpack.c.l.b16 %v38
    %v93 = vunpack.c.l.b16 %v39
    %v94 = vunpack.c.l.b16 %v40
    %v95 = vunpack.c.l.b16 %v41
    %v96 = vpack.c.b16 %v81, %v80
    %v97 = vpack.c.b16 %v83, %v82
    %v98 = vpack.c.b16 %v85, %v84
    %v99 = vpack.c.b16 %v87, %v86
    %v100 = vpack.c.b16 %v89, %v88
    %v101 = vpack.c.b16 %v91, %v90
    %v102 = vpack.c.b16 %v93, %v92
    %v103 = vpack.c.b16 %v95, %v94
    %112 = vmatprep.subr.bf16.mxu0 0
    %113 = vmatpush1.bf16.msra.mxu0 %v103
    %114 = vmatprep.subr.bf16.mxu0 0
    %115 = vmatpush1.bf16.msra.mxu0 %v102
    %116 = vmatprep.subr.bf16.mxu0 0
    %117 = vmatpush1.bf16.msra.mxu0 %v101
    %118 = vmatprep.subr.bf16.mxu0 0
    %119 = vmatpush1.bf16.msra.mxu0 %v100
    %120 = vmatprep.subr.bf16.mxu0 0
    %121 = vmatpush1.bf16.msra.mxu0 %v99
    %122 = vmatprep.subr.bf16.mxu0 0
    %123 = vmatpush1.bf16.msra.mxu0 %v98
    %124 = vmatprep.subr.bf16.mxu0 0
    %125 = vmatpush1.bf16.msra.mxu0 %v97
    %126 = vmatprep.subr.bf16.mxu0 0
    %127 = vmatpush1.bf16.msra.mxu0 %v96
    %128 = vmatprep.subr.bf16.mxu0 0
    %129 = vmatpush2.bf16.msra.mxu0 0
    %130 = vmatprep.subr.bf16.mxu0 0
    %131 = vmatpush2.bf16.msra.mxu0 0
    %132 = vmatprep.subr.bf16.mxu0 0
    %133 = vmatpush2.bf16.msra.mxu0 0
    %134 = vmatprep.subr.bf16.mxu0 0
    %135 = vmatpush2.bf16.msra.mxu0 0
    %136 = vmatprep.subr.bf16.mxu0 0
    %137 = vmatpush2.bf16.msra.mxu0 0
    %138 = vmatprep.subr.bf16.mxu0 0
    %139 = vmatpush2.bf16.msra.mxu0 0
    %140 = vmatprep.subr.bf16.mxu0 0
    %141 = vmatpush2.bf16.msra.mxu0 0
    %142 = vmatprep.subr.bf16.mxu0 0
    %143 = vmatpush2.bf16.msra.mxu0 0
    %144 = vmatprep.mubr.bf16.mxu0 0
    %145 = vmatmul.mubr.bf16.gmra.mxu0 %v59
    %v146 = vpop.f32.mrf.mxu0
    %v147 = vadd.f32 0.0, %v146
    %v148 = vpop.f32.mrf.mxu0
    %v149 = vpop.f32.mrf.mxu0
    %v150 = vadd.f32 0.0, %v149
    %v151 = vpop.f32.mrf.mxu0
    %152 = vmatprep.mubr.bf16.mxu0 0
    %153 = vmatmul.mubr.bf16.gmra.mxu0 %v60
    %v154 = vpop.f32.mrf.mxu0
    %v155 = vadd.f32 0.0, %v154
    %v156 = vpop.f32.mrf.mxu0
    %v157 = vpop.f32.mrf.mxu0
    %v158 = vpop.f32.mrf.mxu0
    %159 = vdwg.mxu0
    %v160 = vadd.f32 %v61, %v147
    %v161 = vadd.f32 %v62, %v150
    %v162 = vadd.f32 %v63, %v155
    %vm163 = vcmask 261120
    %164 = vst.msk [vmem:[#allocation2] sm:$0xff] %vm163, %v160
    %165 = vst.msk [vmem:[#allocation2 + $0x8] sm:$0xff] %vm163, %v161
    %166 = vst.msk [vmem:[#allocation2 + $0x10] sm:$0xff] %vm163, %v162
    %v167 = vld [vmem:[#allocation3] sm:$0xff]
    %v168 = vld [vmem:[#allocation3 + $0x8] sm:$0xff]
    %v169 = vld [vmem:[#allocation3 + $0x10] sm:$0xff]
    %170 = vadd.xlane.f32.xlu0 %v56
    %v171 = vpop.xlane.xlu0 %170
    %172 = vadd.xlane.f32.xlu0 %v57
    %v173 = vpop.xlane.xlu0 %172
    %174 = vadd.xlane.f32.xlu0 %v58
    %v175 = vpop.xlane.xlu0 %174
    %v176 = vadd.f32 %v167, %v171
    %v177 = vadd.f32 %v168, %v173
    %v178 = vadd.f32 %v169, %v175
    %vm179 = vcmask 7168
    %180 = vst.msk [vmem:[#allocation3] sm:$0xff] %vm179, %v176
    %181 = vst.msk [vmem:[#allocation3 + $0x8] sm:$0xff] %vm179, %v177
    %182 = vst.msk [vmem:[#allocation3 + $0x10] sm:$0xff] %vm179, %v178
    // Predicated region
    $region14: #{tpu_custom_call.1} parent=1 // pred_check
      %p183 = pneg %p13
    $region15: #{tpu_custom_call.1} parent=1 // pred_check_branch
      %185 = sbr.rel (%p183) target = $region17
    $region16: #{tpu_custom_call.1} parent=1 // pred_region
      %v186 = vld [vmem:[#allocation3] sm:$0xff]
      %v187 = vld [vmem:[#allocation3 + $0x8] sm:$0xff]
      %v188 = vld [vmem:[#allocation3 + $0x10] sm:$0xff]
      %v189 = vmax.f32 %v186, 1.0
      %v190 = vmax.f32 %v187, 1.0
      %v191 = vmax.f32 %v188, 1.0
      %v192 = vrcp.pop %v189
      %v193 = vrcp.pop %v190
      %v194 = vrcp.pop %v191
      %v195 = vld [vmem:[#allocation2] sm:$0xff]
      %v196 = vld [vmem:[#allocation2 + $0x8] sm:$0xff]
      %v197 = vld [vmem:[#allocation2 + $0x10] sm:$0xff]
      %199 = vset.pattern.permute.xlu0 0
      %200 = vperm.xlu0 %199, %v192
      %v201 = vpop.permute.xlu0 %200
      %204 = vset.pattern.permute.xlu0 0
      %205 = vperm.xlu0 %204, %v193
      %v206 = vpop.permute.xlu0 %205
      %209 = vset.pattern.permute.xlu0 0
      %210 = vperm.xlu0 %209, %v194
      %v211 = vpop.permute.xlu0 %210
      %v213 = vmul.f32 %v195, %v201
      %v214 = vmul.f32 %v196, %v206
      %v215 = vmul.f32 %v197, %v211
      %v216 = vsub.f32 %v213, %v214
      %v217 = vsub.f32 %v213, %v215
      %v218 = vsub.f32 %v214, %v215
      %v219 = vmul.f32 %v216, %v216
      %v220 = vmul.f32 %v217, %v217
      %v221 = vadd.f32 %v219, %v220
      %v222 = vmul.f32 %v218, %v218
      %v223 = vadd.f32 %v221, %v222
      %v224 = vsel %vm163, %v223, 0.0
      %225 = vadd.xlane.f32.xlu0 %v224
      %v226 = vpop.xlane.xlu0 %225
      %v227 = vrot.slane %v226, 4
      %v228 = vadd.f32 %v226, %v227
      %v229 = vrot.slane %v228, 2
      %v230 = vadd.f32 %v228, %v229
      %v231 = vrot.slane %v230, 1
      %v232 = vadd.f32 %v230, %v231
      %s233 = vtos %v232
      %s234 = smul.f32 %s233, 0.0078125
      %s235 = scalar_lea.smem [#allocation4], 0
      %236 = sst [smem:[%s235]] %s234
    $region17: #{tpu_custom_call.1} parent=1 // pred_fallthru
      _
    // Predicated region
    $region18: #{tpu_custom_call.1} parent=1 // pred_check
      _
    $region19: #{tpu_custom_call.1} parent=1 // pred_check_branch
      %238 = sbr.rel (0) target = $region21
    $region20: #{tpu_custom_call.1} parent=1 // pred_region
      %s240 = ssub.s32 16, 16
      %241 = vsyncadd [#allocation5], %s240
      %244 = dma.smem_to_hbm [#allocation4], 16, %s2, [#allocation5]
    $region21: #{tpu_custom_call.1} parent=1 // pred_fallthru
      _
    // Predicated region
    $region22: #{tpu_custom_call.1} parent=1 // pred_check
      _
    $region23: #{tpu_custom_call.1} parent=1 // pred_check_branch
      %246 = sbr.rel (0) target = $region25
    $region24: #{tpu_custom_call.1} parent=1 // pred_region
      %247 = dma.done [#allocation5], 16
    $region25: #{tpu_custom_call.1} parent=1 // pred_fallthru
      _
    %248 = sfence
    %249 = vsyncpa [#allocation5], 1

</llo_original>
